<compile_context>
chip_gen: v7x
topology: tpu7x:2x2x1
jax: 0.10.0
libtpu: 0.0.40
codegen_flags: <defaults>
</compile_context>

<pallas_src>
import jax
import jax.numpy as jnp
from jax.experimental import pallas as pl
from jax.experimental.pallas import tpu as pltpu


def _block_kernel(x_ref, w_ref, b_ref, gmat_ref, g_ref, s_ref, o_ref):
    """One grid step = one batch element x a band of F frames.

    x_ref    : (F, H, W*Cin)      frames, W and Cin fused into lanes (f32 or bf16)
    w_ref    : (W*Cin, 3*W*Cout)  column-folded conv weights (kh blocks concat'd)
    b_ref    : (1, W*Cout)        conv bias tiled across W (f32)
    gmat_ref : (W*Cout, W*Cout)   block-diagonal 0/1 group sum->broadcast matrix
    g_ref    : (1, W*Cout)        gamma*sqrt(Cout)*(scale+1) for this batch, tiled
    s_ref    : (1, W*Cout)        shift for this batch, tiled (zeros if unused)
    o_ref    : (F, H, W*Cout)     f32 output
    """
    F, H, Wc = o_ref.shape
    WCin = x_ref.shape[2]

    # ---- 3x3 conv as a single fused MXU matmul ---------------------------
    # kw taps + W zero-padding live inside w_ref; the matmul emits, for each
    # input row, the partial sums destined for the output row below / at /
    # above it as three Wc-wide lane chunks.
    x2 = x_ref[...].reshape(F * H, WCin)
    t = jnp.dot(x2, w_ref[...], preferred_element_type=jnp.float32)    # (F*H, 3*Wc)
    t = t.reshape(F, H, 3 * Wc)
    t_dn = t[:, :, 0 * Wc:1 * Wc]    # kh=0: input row h feeds output row h+1
    t_mid = t[:, :, 1 * Wc:2 * Wc]   # kh=1: same row
    t_up = t[:, :, 2 * Wc:3 * Wc]    # kh=2: input row h feeds output row h-1

    # Row shift within the band; the inserted zero row == the conv's H padding.
    zero_row = jnp.zeros((F, 1, Wc), jnp.float32)
    from_above = jnp.concatenate([zero_row, t_dn[:, :H - 1, :]], axis=1)
    from_below = jnp.concatenate([t_up[:, 1:, :], zero_row], axis=1)
    y = (t_mid + from_above + from_below + b_ref[...]).reshape(F * H, Wc)

    # ---- RMSNorm: ONE fused group-sum+broadcast matmul (G = red @ bcast) --
    ss_b = jnp.dot(y * y, gmat_ref[...], preferred_element_type=jnp.float32)  # (F*H, Wc)
    inv = jax.lax.rsqrt(jnp.maximum(ss_b, 1e-24))        # == 1 / max(||x||_2, 1e-12)

    # gamma*sqrt(Cout)*(scale+1) and shift were pre-folded in the wrapper.
    z = y * inv * g_ref[...] + s_ref[...]
    o_ref[...] = (z * jax.nn.sigmoid(z)).reshape(F, H, Wc).astype(o_ref.dtype)


def _device_kind():
    try:
        return jax.devices()[0].device_kind.lower()
    except Exception:
        return ""


def _vmem_capacity_bytes():
    try:
        return int(pltpu.get_tpu_info().vmem_capacity_bytes)
    except Exception:
        return 64 << 20   # conservative fallback (v7x physical)


def _pick_frames_per_step(T, B, per_frame_bytes, const_bytes, budget, min_grid):
    """Largest divisor F of T whose per-step footprint fits `budget` while
    keeping B*(T//F) >= min_grid grid steps (min_grid=2 only on 2-TC v7x)."""
    best = 1
    for f in range(1, T + 1):
        if T % f:
            continue
        if f * per_frame_bytes + const_bytes > budget:
            break
        if f == 1 or B * (T // f) >= min_grid:
            best = f
    return best


def block_forward(x, weight, bias, gamma, scale_shift=None, use_bf16=None):
    """Pallas forward of `Block`.

    x      : (B, Cin, T, H, W)  float32 (PyTorch NCDHW convention)
    weight : (Cout, Cin, 1, 3, 3)
    bias   : (Cout,)
    gamma  : (Cout,)            (the (dim,1,1,1) RMSNorm parameter, squeezed)
    scale_shift : None or (scale, shift), each broadcastable to (B, Cout)
    use_bf16    : None (auto from device kind), or bool — bf16 conv-matmul
                  operands with f32 accumulation/output.
    returns: (B, Cout, T, H, W) float32
    """
    B, Cin, T, H, W = x.shape
    Cout = weight.shape[0]
    WCin = W * Cin
    Wc = W * Cout

    dk = _device_kind()
    if use_bf16 is None:
        use_bf16 = ("v6" in dk) or ("v7" in dk) or ("7x" in dk)   # bf16-native MXUs
    cdtype = jnp.bfloat16 if use_bf16 else jnp.float32
    min_grid = 2 if ("v7" in dk or "7x" in dk) else 1             # v7x: 2 TCs/chip

    # NCDHW -> frame-major rows with (W, Cin) fused into the lane dim.
    xf = jnp.transpose(x, (0, 2, 3, 4, 1)).reshape(B, T, H, WCin).astype(cdtype)

    # Column-folded conv weight:
    #   wcat[w_in*Cin+ci, kh*W*Cout + w_out*Cout + co]
    #     = weight[co, ci, 0, kh, w_in - w_out + 1]   (zero outside the 3-tap band)
    wt = jnp.transpose(weight[:, :, 0].astype(jnp.float32), (2, 3, 1, 0))  # (kh, kw, Cin, Cout)
    w_in = jnp.arange(W)[:, None]
    w_out = jnp.arange(W)[None, :]
    kw = w_in - w_out + 1
    valid = ((kw >= 0) & (kw <= 2)).astype(jnp.float32)
    taps = wt[:, jnp.clip(kw, 0, 2)] * valid[None, :, :, None, None]       # (3, W, W, Cin, Cout)
    wb = jnp.transpose(taps, (0, 1, 3, 2, 4)).reshape(3, WCin, Wc)
    wcat = jnp.transpose(wb, (1, 0, 2)).reshape(WCin, 3 * Wc).astype(cdtype)

    # Conv bias tiled across W.
    b_t = jnp.tile(bias.astype(jnp.float32).reshape(-1), W).reshape(1, Wc)

    # Block-diagonal 0/1 "group-sum then broadcast" matrix, built ONCE here
    # (hoisted out of the kernel; fuses the two previous RMSNorm matmuls).
    # Kept f32: it is a tiny matmul and feeds the rsqrt denominator.
    lane = jnp.arange(Wc)
    gmat = (lane[:, None] // Cout == lane[None, :] // Cout).astype(jnp.float32)

    # Fold gamma*sqrt(Cout) and the optional (scale+1)/shift into one per-batch
    # multiplier/adder tiled across W; passed as (B, 1, Wc) (no (B*T, Wc)
    # broadcast written to / re-read from HBM).
    g_base = gamma.astype(jnp.float32).reshape(1, Cout) * (Cout ** 0.5)
    if scale_shift is None:
        g_bc = jnp.broadcast_to(g_base, (B, Cout))
        s_bc = jnp.zeros((B, Cout), jnp.float32)
    else:
        scale, shift = scale_shift
        g_bc = g_base * (scale.reshape(B, Cout).astype(jnp.float32) + 1.0)
        s_bc = shift.reshape(B, Cout).astype(jnp.float32)
    g_eff = jnp.tile(g_bc, (1, W)).reshape(B, 1, Wc)
    s_eff = jnp.tile(s_bc, (1, W)).reshape(B, 1, Wc)

    # Frames per grid step from a VMEM budget that also counts the in-kernel
    # temporaries (the (F,H,3*Wc) conv intermediate + row-shifted copies).
    in_bytes = 2 if use_bf16 else 4
    per_frame = 2 * H * WCin * in_bytes           # x block, double-buffered
    per_frame += 2 * H * Wc * 4                   # out block, double-buffered
    per_frame += 7 * H * Wc * 4                   # conv intermediate + shifted copies (f32)
    const_bytes = 2 * ((WCin * 3 * Wc) * in_bytes + (Wc * Wc + 3 * Wc) * 4)
    vmem_phys = _vmem_capacity_bytes()            # 128 MiB v5e/v6e, 64 MiB v7x
    budget = min(vmem_phys // 4, 16 << 20)
    F = _pick_frames_per_step(T, B, per_frame, const_bytes, budget, min_grid)
    need = F * per_frame + const_bytes
    vmem_limit = int(min(32 << 20, max(16 << 20, 2 * need)))

    out = pl.pallas_call(
        _block_kernel,
        out_shape=jax.ShapeDtypeStruct((B, T, H, Wc), jnp.float32),
        grid_spec=pltpu.PrefetchScalarGridSpec(
            num_scalar_prefetch=0,
            grid=(B, T // F),
            in_specs=[
                pl.BlockSpec((None, F, H, WCin), lambda b, t: (b, t, 0, 0)),
                pl.BlockSpec((WCin, 3 * Wc), lambda b, t: (0, 0)),
                pl.BlockSpec((1, Wc), lambda b, t: (0, 0)),
                pl.BlockSpec((Wc, Wc), lambda b, t: (0, 0)),
                pl.BlockSpec((None, 1, Wc), lambda b, t: (b, 0, 0)),
                pl.BlockSpec((None, 1, Wc), lambda b, t: (b, 0, 0)),
            ],
            out_specs=pl.BlockSpec((None, F, H, Wc), lambda b, t: (b, t, 0, 0)),
        ),
        compiler_params=pltpu.CompilerParams(
            dimension_semantics=("parallel", "parallel"),
            vmem_limit_bytes=vmem_limit),
    )(xf, wcat, b_t, gmat, g_eff, s_eff)

    # (B, T, H, W*Cout) -> (B, Cout, T, H, W)
    return jnp.transpose(out.reshape(B, T, H, W, Cout), (0, 4, 1, 2, 3))


def _reference_forward(x, weight, bias, gamma, scale_shift=None):
    """Plain-JAX reference (mirrors the PyTorch module) for validation."""
    B, Cin, T, H, W = x.shape
    Cout = weight.shape[0]
    y = jax.lax.conv_general_dilated(
        x, weight, window_strides=(1, 1, 1),
        padding=((0, 0), (1, 1), (1, 1)),
        dimension_numbers=("NCDHW", "OIDHW", "NCDHW"),
    ) + bias.reshape(1, Cout, 1, 1, 1)
    l2 = jnp.sqrt(jnp.sum(y * y, axis=1, keepdims=True))
    y = y / jnp.maximum(l2, 1e-12)
    y = y * (Cout ** 0.5) * gamma.reshape(1, Cout, 1, 1, 1)
    if scale_shift is not None:
        scale, shift = scale_shift
        y = y * (scale.reshape(B, Cout, 1, 1, 1) + 1.0) + shift.reshape(B, Cout, 1, 1, 1)
    return y * jax.nn.sigmoid(y)


if __name__ == "__main__":
    key = jax.random.PRNGKey(0)
    k_x, k_w, k_b, k_s, k_t = jax.random.split(key, 5)

    B, Cin, Cout, T, H, W = 2, 4, 8, 4, 16, 16

    x = jax.random.normal(k_x, (B, Cin, T, H, W), jnp.float32)
    weight = jax.random.normal(k_w, (Cout, Cin, 1, 3, 3), jnp.float32) * 0.1
    bias = jax.random.normal(k_b, (Cout,), jnp.float32) * 0.1
    gamma = jnp.ones((Cout,), jnp.float32)  # nn.Parameter(torch.ones(dim,1,1,1))

    scale = jax.random.normal(k_s, (B, Cout), jnp.float32) * 0.1
    shift = jax.random.normal(k_t, (B, Cout), jnp.float32) * 0.1

    ref = jax.block_until_ready(_reference_forward(x, weight, bias, gamma, (scale, shift)))
    ref_ns = jax.block_until_ready(_reference_forward(x, weight, bias, gamma, None))

    # f32 operand path (exact-precision MXU operands), with scale_shift.
    out = jax.block_until_ready(
        block_forward(x, weight, bias, gamma, (scale, shift), use_bf16=False))
    assert out.shape == (B, Cout, T, H, W)
    err = float(jnp.max(jnp.abs(out - ref)))
    assert err < 2e-4, f"mismatch vs reference (f32, scale_shift): {err}"

    # f32 operand path, without scale_shift.
    out_ns = jax.block_until_ready(
        block_forward(x, weight, bias, gamma, None, use_bf16=False))
    err_ns = float(jnp.max(jnp.abs(out_ns - ref_ns)))
    assert err_ns < 2e-4, f"mismatch vs reference (f32, no scale_shift): {err_ns}"

    # bf16 conv-operand path (v6e/v7x MXU-friendly); f32 accumulation/output.
    out_bf = jax.block_until_ready(
        block_forward(x, weight, bias, gamma, (scale, shift), use_bf16=True))
    rel = float(jnp.max(jnp.abs(out_bf - ref) / (1.0 + jnp.abs(ref))))
    assert rel < 6e-2, f"mismatch vs reference (bf16 operands): {rel}"

    print("KERNEL_OK")
</pallas_src>

<mosaic_0001>
module attributes {stable_mosaic.version = 11 : i64} {
  func.func @_block_kernel(%arg0: i32, %arg1: i32, %arg2: memref<1x4x16x64xf32, #tpu.memory_space<vmem>>, %arg3: memref<64x384xf32, #tpu.memory_space<vmem>>, %arg4: memref<1x128xf32, #tpu.memory_space<vmem>>, %arg5: memref<128x128xf32, #tpu.memory_space<vmem>>, %arg6: memref<1x1x128xf32, #tpu.memory_space<vmem>>, %arg7: memref<1x1x128xf32, #tpu.memory_space<vmem>>, %arg8: memref<1x4x16x128xf32, #tpu.memory_space<vmem>>) attributes {dimension_semantics = [#tpu.dimension_semantics<parallel>, #tpu.dimension_semantics<parallel>], iteration_bounds = array<i64: 2, 1>, scalar_prefetch = 0 : i64, scratch_operands = 0 : i64, tpu.core_type = #tpu.core_type<tc>, window_params = [{transform_indices = @transform_0, window_bounds = array<i64: 1, 4, 16, 64>}, {pipeline_mode = #tpu.pipeline_mode<synchronous>, transform_indices = @transform_1, window_bounds = array<i64: 64, 384>}, {pipeline_mode = #tpu.pipeline_mode<synchronous>, transform_indices = @transform_2, window_bounds = array<i64: 1, 128>}, {pipeline_mode = #tpu.pipeline_mode<synchronous>, transform_indices = @transform_3, window_bounds = array<i64: 128, 128>}, {transform_indices = @transform_4, window_bounds = array<i64: 1, 1, 128>}, {transform_indices = @transform_5, window_bounds = array<i64: 1, 1, 128>}, {transform_indices = @transform_6, window_bounds = array<i64: 1, 4, 16, 128>}]} {
    %c0 = arith.constant 0 : index
    %c0_0 = arith.constant 0 : index
    %c0_1 = arith.constant 0 : index
    %c0_2 = arith.constant 0 : index
    %0 = vector.load %arg2[%c0, %c0_0, %c0_1, %c0_2] : memref<1x4x16x64xf32, #tpu.memory_space<vmem>>, vector<1x4x16x64xf32>
    %1 = vector.shape_cast %0 : vector<1x4x16x64xf32> to vector<4x16x64xf32>
    %2 = vector.shape_cast %1 : vector<4x16x64xf32> to vector<64x64xf32>
    %c0_3 = arith.constant 0 : index
    %c0_4 = arith.constant 0 : index
    %3 = vector.load %arg3[%c0_3, %c0_4] : memref<64x384xf32, #tpu.memory_space<vmem>>, vector<64x384xf32>
    %cst = arith.constant dense<0.000000e+00> : vector<64x384xf32>
    %4 = tpu.matmul %2, %3, %cst {dimension_numbers = #tpu.dot_dimension_numbers<[1], [0], [0], [1], [0, 0, 1, 1], [], []>} : vector<64x64xf32>, vector<64x384xf32>, vector<64x384xf32> -> vector<64x384xf32>
    %5 = vector.shape_cast %4 : vector<64x384xf32> to vector<4x16x384xf32>
    %6 = vector.extract_strided_slice %5 {offsets = [0, 0, 0], sizes = [4, 16, 128], strides = [1, 1, 1]} : vector<4x16x384xf32> to vector<4x16x128xf32>
    %7 = vector.extract_strided_slice %5 {offsets = [0, 0, 128], sizes = [4, 16, 128], strides = [1, 1, 1]} : vector<4x16x384xf32> to vector<4x16x128xf32>
    %8 = vector.extract_strided_slice %5 {offsets = [0, 0, 256], sizes = [4, 16, 128], strides = [1, 1, 1]} : vector<4x16x384xf32> to vector<4x16x128xf32>
    %cst_5 = arith.constant 0.000000e+00 : f32
    %9 = vector.broadcast %cst_5 : f32 to vector<4x1x128xf32>
    %10 = vector.extract_strided_slice %6 {offsets = [0, 0, 0], sizes = [4, 15, 128], strides = [1, 1, 1]} : vector<4x16x128xf32> to vector<4x15x128xf32>
    %11 = tpu.concatenate %9, %10 in 1 : vector<4x1x128xf32>, vector<4x15x128xf32> -> vector<4x16x128xf32>
    %12 = vector.extract_strided_slice %8 {offsets = [0, 1, 0], sizes = [4, 15, 128], strides = [1, 1, 1]} : vector<4x16x128xf32> to vector<4x15x128xf32>
    %13 = tpu.concatenate %12, %9 in 1 : vector<4x15x128xf32>, vector<4x1x128xf32> -> vector<4x16x128xf32>
    %14 = arith.addf %7, %11 : vector<4x16x128xf32>
    %15 = arith.addf %14, %13 : vector<4x16x128xf32>
    %c0_6 = arith.constant 0 : index
    %c0_7 = arith.constant 0 : index
    %16 = vector.load %arg4[%c0_6, %c0_7] : memref<1x128xf32, #tpu.memory_space<vmem>>, vector<1x128xf32>
    %17 = vector.shape_cast %16 : vector<1x128xf32> to vector<1x1x128xf32>
    %18 = vector.broadcast %17 : vector<1x1x128xf32> to vector<4x16x128xf32>
    %19 = arith.addf %15, %18 : vector<4x16x128xf32>
    %20 = vector.shape_cast %19 : vector<4x16x128xf32> to vector<64x128xf32>
    %21 = arith.mulf %20, %20 : vector<64x128xf32>
    %c0_8 = arith.constant 0 : index
    %c0_9 = arith.constant 0 : index
    %22 = vector.load %arg5[%c0_8, %c0_9] : memref<128x128xf32, #tpu.memory_space<vmem>>, vector<128x128xf32>
    %cst_10 = arith.constant dense<0.000000e+00> : vector<64x128xf32>
    %23 = tpu.matmul %21, %22, %cst_10 {dimension_numbers = #tpu.dot_dimension_numbers<[1], [0], [0], [1], [0, 0, 1, 1], [], []>} : vector<64x128xf32>, vector<128x128xf32>, vector<64x128xf32> -> vector<64x128xf32>
    %cst_11 = arith.constant 1.000000e-24 : f32
    %24 = vector.broadcast %cst_11 : f32 to vector<64x128xf32>
    %25 = arith.maximumf %23, %24 : vector<64x128xf32>
    %26 = math.rsqrt %25 : vector<64x128xf32>
    %27 = arith.mulf %20, %26 : vector<64x128xf32>
    %c0_12 = arith.constant 0 : index
    %c0_13 = arith.constant 0 : index
    %c0_14 = arith.constant 0 : index
    %28 = vector.load %arg6[%c0_12, %c0_13, %c0_14] : memref<1x1x128xf32, #tpu.memory_space<vmem>>, vector<1x1x128xf32>
    %29 = vector.shape_cast %28 : vector<1x1x128xf32> to vector<1x128xf32>
    %30 = vector.broadcast %29 : vector<1x128xf32> to vector<64x128xf32>
    %31 = arith.mulf %27, %30 : vector<64x128xf32>
    %c0_15 = arith.constant 0 : index
    %c0_16 = arith.constant 0 : index
    %c0_17 = arith.constant 0 : index
    %32 = vector.load %arg7[%c0_15, %c0_16, %c0_17] : memref<1x1x128xf32, #tpu.memory_space<vmem>>, vector<1x1x128xf32>
    %33 = vector.shape_cast %32 : vector<1x1x128xf32> to vector<1x128xf32>
    %34 = vector.broadcast %33 : vector<1x128xf32> to vector<64x128xf32>
    %35 = arith.addf %31, %34 : vector<64x128xf32>
    %36 = arith.negf %35 : vector<64x128xf32>
    %37 = math.exp %36 : vector<64x128xf32>
    %cst_18 = arith.constant 1.000000e+00 : f32
    %38 = vector.broadcast %cst_18 : f32 to vector<64x128xf32>
    %39 = arith.addf %38, %37 : vector<64x128xf32>
    %40 = arith.divf %38, %39 : vector<64x128xf32>
    %41 = arith.mulf %35, %40 : vector<64x128xf32>
    %42 = vector.shape_cast %41 : vector<64x128xf32> to vector<4x16x128xf32>
    %c0_19 = arith.constant 0 : index
    %c0_20 = arith.constant 0 : index
    %c0_21 = arith.constant 0 : index
    %c0_22 = arith.constant 0 : index
    %43 = vector.load %arg8[%c0_19, %c0_20, %c0_21, %c0_22] : memref<1x4x16x128xf32, #tpu.memory_space<vmem>>, vector<1x4x16x128xf32>
    %44 = vector.shape_cast %43 : vector<1x4x16x128xf32> to vector<4x16x128xf32>
    %45 = vector.shape_cast %42 : vector<4x16x128xf32> to vector<1x4x16x128xf32>
    tpu.vector_store %arg8[%c0_19, %c0_20, %c0_21, %c0_22], %45 {strides = array<i32>} : memref<1x4x16x128xf32, #tpu.memory_space<vmem>>, vector<1x4x16x128xf32>,
    return
  }
  func.func @transform_0(%arg0: i32, %arg1: i32) -> (i32, i32, i32, i32) {
    %c0_i32 = arith.constant 0 : i32
    %c0_i32_0 = arith.constant 0 : i32
    %c0_i32_1 = arith.constant 0 : i32
    return %arg0, %arg1, %c0_i32, %c0_i32_0 : i32, i32, i32, i32
  }
  func.func @transform_1(%arg0: i32, %arg1: i32) -> (i32, i32) {
    %c0_i32 = arith.constant 0 : i32
    %c0_i32_0 = arith.constant 0 : i32
    %c0_i32_1 = arith.constant 0 : i32
    return %c0_i32, %c0_i32_0 : i32, i32
  }
  func.func @transform_2(%arg0: i32, %arg1: i32) -> (i32, i32) {
    %c0_i32 = arith.constant 0 : i32
    %c0_i32_0 = arith.constant 0 : i32
    %c0_i32_1 = arith.constant 0 : i32
    return %c0_i32, %c0_i32_0 : i32, i32
  }
  func.func @transform_3(%arg0: i32, %arg1: i32) -> (i32, i32) {
    %c0_i32 = arith.constant 0 : i32
    %c0_i32_0 = arith.constant 0 : i32
    %c0_i32_1 = arith.constant 0 : i32
    return %c0_i32, %c0_i32_0 : i32, i32
  }
  func.func @transform_4(%arg0: i32, %arg1: i32) -> (i32, i32, i32) {
    %c0_i32 = arith.constant 0 : i32
    %c0_i32_0 = arith.constant 0 : i32
    %c0_i32_1 = arith.constant 0 : i32
    return %arg0, %c0_i32, %c0_i32_0 : i32, i32, i32
  }
  func.func @transform_5(%arg0: i32, %arg1: i32) -> (i32, i32, i32) {
    %c0_i32 = arith.constant 0 : i32
    %c0_i32_0 = arith.constant 0 : i32
    %c0_i32_1 = arith.constant 0 : i32
    return %arg0, %c0_i32, %c0_i32_0 : i32, i32, i32
  }
  func.func @transform_6(%arg0: i32, %arg1: i32) -> (i32, i32, i32, i32) {
    %c0_i32 = arith.constant 0 : i32
    %c0_i32_0 = arith.constant 0 : i32
    %c0_i32_1 = arith.constant 0 : i32
    return %arg0, %arg1, %c0_i32, %c0_i32_0 : i32, i32, i32, i32
  }
}

</mosaic_0001>

<llo_original>
// kernel: tpu_custom_call.1
$region0: #{tpu_custom_call.1}
  #allocation0 [shape = 'u32[]', space=smem, size = 0x4, offset = 0x4, fixed_abs, tag = 'smem constant byte address 0x4 - core index']
  #allocation1 [shape = 'u32[144,128]{1,0:T(1,128)}', space=vmem, size = 0x12000, scoped, tag = 'internal scratch']
  %s0 = inlined_call_operand.hbm [shape: f32[2,4,16,64], index: 0, kind: input, shape index: {}]
  %s1 = inlined_call_operand.hbm [shape: f32[64,384], index: 1, kind: input, shape index: {}]
  %s2 = inlined_call_operand.vmem [shape: f32[1,128], index: 2, kind: input, shape index: {}]
  %s3 = inlined_call_operand.hbm [shape: f32[128,128], index: 3, kind: input, shape index: {}]
  %s4 = inlined_call_operand.vmem [shape: f32[2,1,128], index: 4, kind: input, shape index: {}]
  %s5 = inlined_call_operand.vmem [shape: f32[2,1,128], index: 5, kind: input, shape index: {}]
  %s6 = inlined_call_operand.hbm [shape: f32[2,4,16,128], index: 6, kind: output, shape index: {}]
  %s7 = sld [smem:[#allocation0]]
  $region69: #{tpu_custom_call.1} parent=0
    _
  %s9 = ssub.s32 1, %s7
  %s10 = scalar_select 0, %s9, %s7
  $region1: #{tpu_custom_call.1} parent=0
    #allocation2 [shape = 'u8[65536]{0}', space=vmem, size = 0x10000, scoped, tag = 'input window, operand 0']
    #allocation3 [shape = 's32[2]{0}', space=sflag, size = 0x8, scoped, tag = 'scoped memory for tpu_custom_call.1']
    #allocation4 [shape = 's32[2]{0}', space=sflag, size = 0x8, scoped, tag = 'scoped memory for tpu_custom_call.1']
    #allocation5 [shape = 'u8[98304]{0}', space=vmem, size = 0x18000, scoped, tag = 'input window, operand 1, single buffered']
    #allocation6 [shape = 's32[1]{0}', space=sflag, size = 0x4, scoped, tag = 'scoped memory for tpu_custom_call.1']
    #allocation7 [shape = 'u8[65536]{0}', space=vmem, size = 0x10000, scoped, tag = 'input window, operand 3, single buffered']
    #allocation8 [shape = 'u8[65536]{0}', space=vmem, size = 0x10000, scoped, tag = 'output window, operand 0']
    %11 = vsyncpa [#allocation3], 0
    %s12 = scalar_lea.sflag [#allocation3], 1
    %13 = vsyncpa %s12, 0
    %14 = vsyncpa [#allocation6], 0
    %15 = vsyncpa [#allocation4], 0
    %s16 = scalar_lea.sflag [#allocation4], 1
    %17 = vsyncpa %s16, 0
    loop: start=0, step=1, limit=4
    $region2: #{tpu_custom_call.1} parent=1 // loop_pre_header
      _
    $region3: #{tpu_custom_call.1} parent=1 // loop_header
      %s19 = sphi 0, %s23
      %p20 = scmp.ge.s32.totalorder %s19, 4
      %s26 = sphi 0, %s38
      %s27 = sphi 0, %s34
      %s28 = sphi 0, %s26
      %s29 = sphi 0, %s27
      %s30 = sphi 0, %s28
      %s31 = sphi 0, %s29
      %s43 = sphi 0, %s45
      %s46 = sphi 0, %s43
      %s47 = sphi 0, %s46
      %s63 = sphi 0, %s47
      %s67 = sphi 0, %s67
      %s69 = sphi 0, %s67
      %s70 = sphi 0, %s69
      %s84 = sphi 0, %s70
      %s88 = sphi 0, %s88
      %s90 = sphi 0, %s88
      %s91 = sphi 0, %s90
      %s105 = sphi 0, %s91
      %s109 = sphi 0, %s109
      %s111 = sphi 0, %s109
      %s112 = sphi 0, %s111
      %s126 = sphi 0, %s112
      %s132 = sphi 0, %s134
      %s135 = sphi 0, %s132
      %s136 = sphi 0, %s135
      %s152 = sphi 0, %s136
      %s158 = sphi 0, %s160
      %s161 = sphi 0, %s158
      %s162 = sphi 0, %s161
      %s178 = sphi 0, %s162
      %s186 = sphi 0, %s188
      %s189 = sphi 0, %s186
      %s190 = sphi 0, %s189
      %s206 = sphi 0, %s190
    $region4: #{tpu_custom_call.1} parent=1 // loop_header_branch
      %22 = sbr.rel (%p20) target = $region8
    $region5: #{tpu_custom_call.1} parent=1 // loop_body
      %s24 = ssub.s32 %s19, 1
      %s25 = ssub.s32 %s19, 2
      %s32 = sadd.s32 1, %s27
      %p33 = scmp.ge.s32.totalorder %s32, 1
      %s34 = scalar_select %p33, 0, %s32
      %s35 = sadd.s32 1, %s26
      %s36 = scalar_select %p33, %s35, %s26
      %p37 = scmp.ge.s32.totalorder %s36, 2
      %s38 = scalar_select %p37, 0, %s36
      %s39 = ssub.s32 %s26, %s38
      %s40 = ssub.s32 %s27, %s34
      %s41 = sor.u32 %s39, %s40
      %p42 = scmp.eq.s32.totalorder %s41, 0
      %s44 = sadd.s32 %s43, 1
      %s45 = scalar_select %p42, %s43, %s44
      %p48 = pneg %p42
      %p49 = scmp.eq.s32.totalorder %s19, 1
      %p50 = por %p48, %p49
      %p51 = scmp.ne.s32.totalorder %s43, %s46
      %p52 = scmp.eq.s32.totalorder %s19, 0
      %p53 = por %p51, %p52
      %p54 = scmp.ne.s32.totalorder %s43, %s46
      %p55 = scmp.eq.s32.totalorder %s24, 1
      %p56 = por %p54, %p55
      %p57 = scmp.ne.s32.totalorder %s46, %s47
      %p58 = scmp.eq.s32.totalorder %s24, 0
      %p59 = por %p57, %p58
      %p60 = scmp.ne.s32.totalorder %s46, %s47
      %p61 = scmp.eq.s32.totalorder %s25, 1
      %p62 = por %p60, %p61
      %p64 = scmp.ne.s32.totalorder %s47, %s63
      %p65 = scmp.eq.s32.totalorder %s25, 0
      %p66 = por %p64, %p65
      %s68 = sadd.s32 %s67, 1
      %p71 = scmp.eq.s32.totalorder %s19, 1
      %p72 = scmp.ne.s32.totalorder %s67, %s69
      %p73 = scmp.eq.s32.totalorder %s19, 0
      %p74 = por %p72, %p73
      %p75 = scmp.ne.s32.totalorder %s67, %s69
      %p76 = scmp.eq.s32.totalorder %s24, 1
      %p77 = por %p75, %p76
      %p78 = scmp.ne.s32.totalorder %s69, %s70
      %p79 = scmp.eq.s32.totalorder %s24, 0
      %p80 = por %p78, %p79
      %p81 = scmp.ne.s32.totalorder %s69, %s70
      %p82 = scmp.eq.s32.totalorder %s25, 1
      %p83 = por %p81, %p82
      %p85 = scmp.ne.s32.totalorder %s70, %s84
      %p86 = scmp.eq.s32.totalorder %s25, 0
      %p87 = por %p85, %p86
      %s89 = sadd.s32 %s88, 1
      %p92 = scmp.eq.s32.totalorder %s19, 1
      %p93 = scmp.ne.s32.totalorder %s88, %s90
      %p94 = scmp.eq.s32.totalorder %s19, 0
      %p95 = por %p93, %p94
      %p96 = scmp.ne.s32.totalorder %s88, %s90
      %p97 = scmp.eq.s32.totalorder %s24, 1
      %p98 = por %p96, %p97
      %p99 = scmp.ne.s32.totalorder %s90, %s91
      %p100 = scmp.eq.s32.totalorder %s24, 0
      %p101 = por %p99, %p100
      %p102 = scmp.ne.s32.totalorder %s90, %s91
      %p103 = scmp.eq.s32.totalorder %s25, 1
      %p104 = por %p102, %p103
      %p106 = scmp.ne.s32.totalorder %s91, %s105
      %p107 = scmp.eq.s32.totalorder %s25, 0
      %p108 = por %p106, %p107
      %s110 = sadd.s32 %s109, 1
      %p113 = scmp.eq.s32.totalorder %s19, 1
      %p114 = scmp.ne.s32.totalorder %s109, %s111
      %p115 = scmp.eq.s32.totalorder %s19, 0
      %p116 = por %p114, %p115
      %p117 = scmp.ne.s32.totalorder %s109, %s111
      %p118 = scmp.eq.s32.totalorder %s24, 1
      %p119 = por %p117, %p118
      %p120 = scmp.ne.s32.totalorder %s111, %s112
      %p121 = scmp.eq.s32.totalorder %s24, 0
      %p122 = por %p120, %p121
      %p123 = scmp.ne.s32.totalorder %s111, %s112
      %p124 = scmp.eq.s32.totalorder %s25, 1
      %p125 = por %p123, %p124
      %p127 = scmp.ne.s32.totalorder %s112, %s126
      %p128 = scmp.eq.s32.totalorder %s25, 0
      %p129 = por %p127, %p128
      %s130 = ssub.s32 %s26, %s38
      %p131 = scmp.eq.s32.totalorder %s130, 0
      %s133 = sadd.s32 %s132, 1
      %s134 = scalar_select %p131, %s132, %s133
      %p137 = pneg %p131
      %p138 = scmp.eq.s32.totalorder %s19, 1
      %p139 = por %p137, %p138
      %p140 = scmp.ne.s32.totalorder %s132, %s135
      %p141 = scmp.eq.s32.totalorder %s19, 0
      %p142 = por %p140, %p141
      %p143 = scmp.ne.s32.totalorder %s132, %s135
      %p144 = scmp.eq.s32.totalorder %s24, 1
      %p145 = por %p143, %p144
      %p146 = scmp.ne.s32.totalorder %s135, %s136
      %p147 = scmp.eq.s32.totalorder %s24, 0
      %p148 = por %p146, %p147
      %p149 = scmp.ne.s32.totalorder %s135, %s136
      %p150 = scmp.eq.s32.totalorder %s25, 1
      %p151 = por %p149, %p150
      %p153 = scmp.ne.s32.totalorder %s136, %s152
      %p154 = scmp.eq.s32.totalorder %s25, 0
      %p155 = por %p153, %p154
      %s156 = ssub.s32 %s26, %s38
      %p157 = scmp.eq.s32.totalorder %s156, 0
      %s159 = sadd.s32 %s158, 1
      %s160 = scalar_select %p157, %s158, %s159
      %p163 = pneg %p157
      %p164 = scmp.eq.s32.totalorder %s19, 1
      %p165 = por %p163, %p164
      %p166 = scmp.ne.s32.totalorder %s158, %s161
      %p167 = scmp.eq.s32.totalorder %s19, 0
      %p168 = por %p166, %p167
      %p169 = scmp.ne.s32.totalorder %s158, %s161
      %p170 = scmp.eq.s32.totalorder %s24, 1
      %p171 = por %p169, %p170
      %p172 = scmp.ne.s32.totalorder %s161, %s162
      %p173 = scmp.eq.s32.totalorder %s24, 0
      %p174 = por %p172, %p173
      %p175 = scmp.ne.s32.totalorder %s161, %s162
      %p176 = scmp.eq.s32.totalorder %s25, 1
      %p177 = por %p175, %p176
      %p179 = scmp.ne.s32.totalorder %s162, %s178
      %p180 = scmp.eq.s32.totalorder %s25, 0
      %p181 = por %p179, %p180
      %s182 = ssub.s32 %s26, %s38
      %s183 = ssub.s32 %s27, %s34
      %s184 = sor.u32 %s182, %s183
      %p185 = scmp.eq.s32.totalorder %s184, 0
      %s187 = sadd.s32 %s186, 1
      %s188 = scalar_select %p185, %s186, %s187
      %p191 = pneg %p185
      %p192 = scmp.eq.s32.totalorder %s19, 1
      %p193 = por %p191, %p192
      %p194 = scmp.ne.s32.totalorder %s186, %s189
      %p195 = scmp.eq.s32.totalorder %s19, 0
      %p196 = por %p194, %p195
      %p197 = scmp.ne.s32.totalorder %s186, %s189
      %p198 = scmp.eq.s32.totalorder %s24, 1
      %p199 = por %p197, %p198
      %p200 = scmp.ne.s32.totalorder %s189, %s190
      %p201 = scmp.eq.s32.totalorder %s24, 0
      %p202 = por %p200, %p201
      %p203 = scmp.ne.s32.totalorder %s189, %s190
      %p204 = scmp.eq.s32.totalorder %s25, 1
      %p205 = por %p203, %p204
      %p207 = scmp.ne.s32.totalorder %s190, %s206
      %p208 = scmp.eq.s32.totalorder %s25, 0
      %p209 = por %p207, %p208
      %p210 = scmp.le.s32.totalorder 1, %s19
      %p211 = scmp.lt.s32.totalorder %s19, 3
      %p212 = pnand %p210, %p211
      %p213 = pneg %p212
      // Predicated region
      $region9: #{tpu_custom_call.1} parent=5 // pred_check
        _
      $region10: #{tpu_custom_call.1} parent=5 // pred_check_branch
        %215 = sbr.rel (%p212) target = $region12
      $region11: #{tpu_custom_call.1} parent=5 // pred_region
        %s216 = ssub.s32 %s19, 1
        // Predicated region
        $region13: #{tpu_custom_call.1} parent=11 // pred_check
          %p217 = pneg %p80
        $region14: #{tpu_custom_call.1} parent=11 // pred_check_branch
          %219 = sbr.rel (%p217) target = $region16
        $region15: #{tpu_custom_call.1} parent=11 // pred_region
          %s221 = ssub.s32 3072, 3072
          %222 = vsyncadd [#allocation6], %s221
          %s223 = sshll.u32 [#allocation5], 4
          %s224 = int_to_ptr.vmem [resolvable:$true] %s223
          %229 = dma.hbm_to_vmem [thread:$0]  %s1, 3072, %s224, [#allocation6], 384, 384, 24
        $region16: #{tpu_custom_call.1} parent=11 // pred_fallthru
          _
        // Predicated region
        $region17: #{tpu_custom_call.1} parent=11 // pred_check
          %p230 = pneg %p101
        $region18: #{tpu_custom_call.1} parent=11 // pred_check_branch
          %232 = sbr.rel (%p230) target = $region20
        $region19: #{tpu_custom_call.1} parent=11 // pred_region
          _
        $region20: #{tpu_custom_call.1} parent=11 // pred_fallthru
          _
        // Predicated region
        $region21: #{tpu_custom_call.1} parent=11 // pred_check
          %p233 = pneg %p122
        $region22: #{tpu_custom_call.1} parent=11 // pred_check_branch
          %235 = sbr.rel (%p233) target = $region24
        $region23: #{tpu_custom_call.1} parent=11 // pred_region
          %s237 = ssub.s32 2048, 2048
          %238 = vsyncadd [#allocation6], %s237
          %s239 = sshll.u32 [#allocation7], 4
          %s240 = int_to_ptr.vmem [resolvable:$true] %s239
          %245 = dma.hbm_to_vmem [thread:$0]  %s3, 2048, %s240, [#allocation6], 128, 128, 8
        $region24: #{tpu_custom_call.1} parent=11 // pred_fallthru
          _
      $region12: #{tpu_custom_call.1} parent=5 // pred_fallthru
        _
      %p246 = scmp.lt.s32.totalorder %s19, 2
      // Predicated region
      $region25: #{tpu_custom_call.1} parent=5 // pred_check
        %p247 = pneg %p246
      $region26: #{tpu_custom_call.1} parent=5 // pred_check_branch
        %249 = sbr.rel (%p247) target = $region28
      $region27: #{tpu_custom_call.1} parent=5 // pred_region
        // Predicated region
        $region29: #{tpu_custom_call.1} parent=27 // pred_check
          %p250 = pneg %p53
        $region30: #{tpu_custom_call.1} parent=27 // pred_check_branch
          %252 = sbr.rel (%p250) target = $region32
        $region31: #{tpu_custom_call.1} parent=27 // pred_region
          %s253 = sand.u32 %s43, 1
          %s254 = scalar_lea.sflag [#allocation3], %s253
          %s255 = sand.u32 %s43, 1
          %s256 = smul.addr %s255, 64
          %s257 = scalar_lea.vmem [#allocation2], %s256
          %s258 = smul.u32 4, %s27
          %s260 = ssub.s32 1024, 1024
          %261 = vsyncadd %s254, %s260
          %s262 = smul.addr %s258, 2
          %s263 = smul.addr %s26, 8
          %s264 = sadd.s32 %s262, %s263
          %s265 = smul.addr %s264, 128
          %s266 = scalar_lea.hbm %s0, %s265
          %s267 = sshll.u32 %s257, 4
          %s268 = int_to_ptr.vmem [resolvable:$true] %s267
          %273 = dma.hbm_to_vmem [thread:$0]  %s266, 1024, %s268, %s254, 128, 128, 8
        $region32: #{tpu_custom_call.1} parent=27 // pred_fallthru
          _
        // Predicated region
        $region33: #{tpu_custom_call.1} parent=27 // pred_check
          %p274 = pneg %p142
        $region34: #{tpu_custom_call.1} parent=27 // pred_check_branch
          %276 = sbr.rel (%p274) target = $region36
        $region35: #{tpu_custom_call.1} parent=27 // pred_region
          %p277 = scmp.lt.s32.totalorder %s26, 1
          %s278 = scalar_select %p277, %s26, 1
          %s279 = scalar_lea.vmem %s4, %s278
        $region36: #{tpu_custom_call.1} parent=27 // pred_fallthru
          _
        // Predicated region
        $region37: #{tpu_custom_call.1} parent=27 // pred_check
          %p280 = pneg %p168
        $region38: #{tpu_custom_call.1} parent=27 // pred_check_branch
          %282 = sbr.rel (%p280) target = $region40
        $region39: #{tpu_custom_call.1} parent=27 // pred_region
          %p283 = scmp.lt.s32.totalorder %s26, 1
          %s284 = scalar_select %p283, %s26, 1
          %s285 = scalar_lea.vmem %s5, %s284
        $region40: #{tpu_custom_call.1} parent=27 // pred_fallthru
          _
      $region28: #{tpu_custom_call.1} parent=5 // pred_fallthru
        _
      %p286 = scmp.le.s32.totalorder 1, %s19
      %p287 = scmp.lt.s32.totalorder %s19, 3
      %p288 = pnand %p286, %p287
      %p289 = pneg %p288
      // Predicated region
      $region41: #{tpu_custom_call.1} parent=5 // pred_check
        _
      $region42: #{tpu_custom_call.1} parent=5 // pred_check_branch
        %291 = sbr.rel (%p288) target = $region44
      $region43: #{tpu_custom_call.1} parent=5 // pred_region
        %s292 = ssub.s32 %s19, 1
        %s293 = sand.u32 %s46, 1
        %s294 = scalar_lea.sflag [#allocation3], %s293
        %s295 = sand.u32 %s46, 1
        %s296 = smul.addr %s295, 64
        %s297 = scalar_lea.vmem [#allocation2], %s296
        // Predicated region
        $region45: #{tpu_custom_call.1} parent=43 // pred_check
          %p298 = pneg %p59
        $region46: #{tpu_custom_call.1} parent=43 // pred_check_branch
          %300 = sbr.rel (%p298) target = $region48
        $region47: #{tpu_custom_call.1} parent=43 // pred_region
          %301 = dma.done %s294, 1024
        $region48: #{tpu_custom_call.1} parent=43 // pred_fallthru
          _
        // Predicated region
        $region49: #{tpu_custom_call.1} parent=43 // pred_check
          %p302 = pneg %p80
        $region50: #{tpu_custom_call.1} parent=43 // pred_check_branch
          %304 = sbr.rel (%p302) target = $region52
        $region51: #{tpu_custom_call.1} parent=43 // pred_region
          %305 = dma.done [#allocation6], 3072
        $region52: #{tpu_custom_call.1} parent=43 // pred_fallthru
          _
        // Predicated region
        $region53: #{tpu_custom_call.1} parent=43 // pred_check
          %p306 = pneg %p122
        $region54: #{tpu_custom_call.1} parent=43 // pred_check_branch
          %308 = sbr.rel (%p306) target = $region56
        $region55: #{tpu_custom_call.1} parent=43 // pred_region
          %309 = dma.done [#allocation6], 2048
        $region56: #{tpu_custom_call.1} parent=43 // pred_fallthru
          _
        %s310 = sand.u32 %s46, 1
        %s311 = scalar_lea.sflag [#allocation3], %s310
        %s312 = sand.u32 %s46, 1
        %s313 = smul.addr %s312, 64
        %s314 = scalar_lea.vmem [#allocation2], %s313
        %p315 = pneg %p59
        %p316 = pneg %p56
        %p317 = pneg %p80
        %p318 = pneg %p77
        %p319 = pneg %p101
        %p320 = pneg %p98
        %p321 = pneg %p122
        %p322 = pneg %p119
        %p323 = scmp.lt.s32.totalorder %s28, 1
        %s324 = scalar_select %p323, %s28, 1
        %s325 = scalar_lea.vmem %s4, %s324
        %p326 = pneg %p148
        %p327 = pneg %p145
        %p328 = scmp.lt.s32.totalorder %s28, 1
        %s329 = scalar_select %p328, %s28, 1
        %s330 = scalar_lea.vmem %s5, %s329
        %p331 = pneg %p174
        %p332 = pneg %p171
        %p333 = pneg %p202
        %p334 = pneg %p199
        %s335 = sand.u32 %s189, 1
        %s336 = scalar_lea.sflag [#allocation4], %s335
        %s337 = sand.u32 %s189, 1
        %s338 = smul.addr %s337, 64
        %s339 = scalar_lea.vmem [#allocation8], %s338
        %s340 = smul.u32 4, %s29
        %p341 = scmp.lt.s32.totalorder %s28, 1
        %s342 = scalar_select %p341, %s28, 1
        %s343 = scalar_lea.vmem %s4, %s342
        %p344 = scmp.lt.s32.totalorder %s28, 1
        %s345 = scalar_select %p344, %s28, 1
        %s346 = scalar_lea.vmem %s5, %s345
        %s347 = smul.u32 4, %s29
        %v348 = vld [vmem:[%s297] sm:$0xff]
        %v349 = vld [vmem:[%s297 + $0x8] sm:$0xff]
        %v350 = vld [vmem:[%s297 + $0x10] sm:$0xff]
        %v351 = vld [vmem:[%s297 + $0x18] sm:$0xff]
        %v352 = vld [vmem:[%s297 + $0x20] sm:$0xff]
        %v353 = vld [vmem:[%s297 + $0x28] sm:$0xff]
        %v354 = vld [vmem:[%s297 + $0x30] sm:$0xff]
        %v355 = vld [vmem:[%s297 + $0x38] sm:$0xff]
        %v356 = vld [vmem:[#allocation5] sm:$0xff]
        %v357 = vld [vmem:[#allocation5 + $0x8] sm:$0xff]
        %v358 = vld [vmem:[#allocation5 + $0x10] sm:$0xff]
        %v359 = vld [vmem:[#allocation5 + $0x18] sm:$0xff]
        %v360 = vld [vmem:[#allocation5 + $0x20] sm:$0xff]
        %v361 = vld [vmem:[#allocation5 + $0x28] sm:$0xff]
        %v362 = vld [vmem:[#allocation5 + $0x30] sm:$0xff]
        %v363 = vld [vmem:[#allocation5 + $0x38] sm:$0xff]
        %v364 = vld [vmem:[#allocation5 + $0x40] sm:$0xff]
        %v365 = vld [vmem:[#allocation5 + $0x48] sm:$0xff]
        %v366 = vld [vmem:[#allocation5 + $0x50] sm:$0xff]
        %v367 = vld [vmem:[#allocation5 + $0x58] sm:$0xff]
        %v368 = vld [vmem:[#allocation5 + $0x60] sm:$0xff]
        %v369 = vld [vmem:[#allocation5 + $0x68] sm:$0xff]
        %v370 = vld [vmem:[#allocation5 + $0x70] sm:$0xff]
        %v371 = vld [vmem:[#allocation5 + $0x78] sm:$0xff]
        %v372 = vld [vmem:[#allocation5 + $0x80] sm:$0xff]
        %v373 = vld [vmem:[#allocation5 + $0x88] sm:$0xff]
        %v374 = vld [vmem:[#allocation5 + $0x90] sm:$0xff]
        %v375 = vld [vmem:[#allocation5 + $0x98] sm:$0xff]
        %v376 = vld [vmem:[#allocation5 + $0xa0] sm:$0xff]
        %v377 = vld [vmem:[#allocation5 + $0xa8] sm:$0xff]
        %v378 = vld [vmem:[#allocation5 + $0xb0] sm:$0xff]
        %v379 = vld [vmem:[#allocation5 + $0xb8] sm:$0xff]
        %vm380 = vcmask 523264
        %v382 = vsel %vm380, %v348, 0
        %v385 = vsel %vm380, %v349, 0
        %v388 = vsel %vm380, %v350, 0
        %v391 = vsel %vm380, %v351, 0
        %v394 = vsel %vm380, %v352, 0
        %v397 = vsel %vm380, %v353, 0
        %v400 = vsel %vm380, %v354, 0
        %v403 = vsel %vm380, %v355, 0
        %405 = vmatprep.subr.mxu0 %v357
        %406 = vmatpush1.msra.mxu0 %v356
        %407 = vmatprep.subr.mxu0 %v360
        %408 = vmatpush1.msra.mxu0 %v359
        %409 = vmatprep.subr.mxu0 %v363
        %410 = vmatpush1.msra.mxu0 %v362
        %411 = vmatprep.subr.mxu0 %v366
        %412 = vmatpush1.msra.mxu0 %v365
        %413 = vmatprep.subr.mxu0 %v369
        %414 = vmatpush1.msra.mxu0 %v368
        %415 = vmatprep.subr.mxu0 %v372
        %416 = vmatpush1.msra.mxu0 %v371
        %417 = vmatprep.subr.mxu0 %v375
        %418 = vmatpush1.msra.mxu0 %v374
        %419 = vmatprep.subr.mxu0 %v378
        %420 = vmatpush1.msra.mxu0 %v377
        %421 = vmatprep.subr.mxu0 0.0
        %422 = vmatpush1.msra.mxu0 0.0
        %423 = vmatprep.subr.mxu0 0.0
        %424 = vmatpush1.msra.mxu0 0.0
        %425 = vmatprep.subr.mxu0 0.0
        %426 = vmatpush1.msra.mxu0 0.0
        %427 = vmatprep.subr.mxu0 0.0
        %428 = vmatpush1.msra.mxu0 0.0
        %429 = vmatprep.subr.mxu0 0.0
        %430 = vmatpush1.msra.mxu0 0.0
        %431 = vmatprep.subr.mxu0 0.0
        %432 = vmatpush1.msra.mxu0 0.0
        %433 = vmatprep.subr.mxu0 0.0
        %434 = vmatpush1.msra.mxu0 0.0
        %435 = vmatprep.subr.mxu0 0.0
        %436 = vmatpush1.msra.mxu0 0.0
        %437 = vmatprep.subr.mxu0 0.0
        %438 = vmatpush1.msra.mxu0 0.0
        %439 = vmatprep.subr.mxu0 0.0
        %440 = vmatpush1.msra.mxu0 0.0
        %441 = vmatprep.subr.mxu0 0.0
        %442 = vmatpush1.msra.mxu0 0.0
        %443 = vmatprep.subr.mxu0 0.0
        %444 = vmatpush1.msra.mxu0 0.0
        %445 = vmatprep.subr.mxu0 0.0
        %446 = vmatpush1.msra.mxu0 0.0
        %447 = vmatprep.subr.mxu0 0.0
        %448 = vmatpush1.msra.mxu0 0.0
        %449 = vmatprep.subr.mxu0 0.0
        %450 = vmatpush1.msra.mxu0 0.0
        %451 = vmatprep.subr.mxu0 0.0
        %452 = vmatpush1.msra.mxu0 0.0
        %453 = vmatprep.subr.mxu0 0.0
        %454 = vmatpush1.msra.mxu0 0.0
        %455 = vmatprep.subr.mxu0 0.0
        %456 = vmatpush1.msra.mxu0 0.0
        %457 = vmatprep.subr.mxu0 0.0
        %458 = vmatpush1.msra.mxu0 0.0
        %459 = vmatprep.subr.mxu0 0.0
        %460 = vmatpush1.msra.mxu0 0.0
        %461 = vmatprep.subr.mxu0 0.0
        %462 = vmatpush1.msra.mxu0 0.0
        %463 = vmatprep.subr.mxu0 0.0
        %464 = vmatpush1.msra.mxu0 0.0
        %465 = vmatprep.subr.mxu0 0.0
        %466 = vmatpush1.msra.mxu0 0.0
        %467 = vmatprep.subr.mxu0 0.0
        %468 = vmatpush1.msra.mxu0 0.0
        %469 = vmatprep.mubr.f32.mxu0 0.0
        %470 = vmatmul.mubr.f32.gmra.mrb[0].mxu0 %v382
        %v471 = vpop.f32.mrb[0].mxu0
        %v472 = vadd.f32 0.0, %v471
        %v473 = vpop.f32.mrb[0].mxu0
        %v474 = vadd.f32 0.0, %v473
        %475 = vmatprep.mubr.f32.mxu0 0.0
        %476 = vmatmul.mubr.f32.gmra.mrb[0].mxu0 %v385
        %v477 = vpop.f32.mrb[0].mxu0
        %v478 = vadd.f32 0.0, %v477
        %v479 = vpop.f32.mrb[0].mxu0
        %v480 = vadd.f32 0.0, %v479
        %481 = vmatprep.mubr.f32.mxu0 0.0
        %482 = vmatmul.mubr.f32.gmra.mrb[0].mxu0 %v388
        %v483 = vpop.f32.mrb[0].mxu0
        %v484 = vadd.f32 0.0, %v483
        %v485 = vpop.f32.mrb[0].mxu0
        %v486 = vadd.f32 0.0, %v485
        %487 = vmatprep.mubr.f32.mxu0 0.0
        %488 = vmatmul.mubr.f32.gmra.mrb[0].mxu0 %v391
        %v489 = vpop.f32.mrb[0].mxu0
        %v490 = vadd.f32 0.0, %v489
        %v491 = vpop.f32.mrb[0].mxu0
        %v492 = vadd.f32 0.0, %v491
        %493 = vmatprep.mubr.f32.mxu0 0.0
        %494 = vmatmul.mubr.f32.gmra.mrb[0].mxu0 %v394
        %v495 = vpop.f32.mrb[0].mxu0
        %v496 = vadd.f32 0.0, %v495
        %v497 = vpop.f32.mrb[0].mxu0
        %v498 = vadd.f32 0.0, %v497
        %499 = vmatprep.mubr.f32.mxu0 0.0
        %500 = vmatmul.mubr.f32.gmra.mrb[0].mxu0 %v397
        %v501 = vpop.f32.mrb[0].mxu0
        %v502 = vadd.f32 0.0, %v501
        %v503 = vpop.f32.mrb[0].mxu0
        %v504 = vadd.f32 0.0, %v503
        %505 = vmatprep.mubr.f32.mxu0 0.0
        %506 = vmatmul.mubr.f32.gmra.mrb[0].mxu0 %v400
        %v507 = vpop.f32.mrb[0].mxu0
        %v508 = vadd.f32 0.0, %v507
        %v509 = vpop.f32.mrb[0].mxu0
        %v510 = vadd.f32 0.0, %v509
        %511 = vmatprep.mubr.f32.mxu0 0.0
        %512 = vmatmul.mubr.f32.gmra.mrb[0].mxu0 %v403
        %v513 = vpop.f32.mrb[0].mxu0
        %v514 = vadd.f32 0.0, %v513
        %v515 = vpop.f32.mrb[0].mxu0
        %v516 = vadd.f32 0.0, %v515
        %517 = vdwg.mxu0
        %518 = vmatprep.subr.mxu0 0.0
        %519 = vmatpush1.msra.mxu0 %v358
        %520 = vmatprep.subr.mxu0 0.0
        %521 = vmatpush1.msra.mxu0 %v361
        %522 = vmatprep.subr.mxu0 0.0
        %523 = vmatpush1.msra.mxu0 %v364
        %524 = vmatprep.subr.mxu0 0.0
        %525 = vmatpush1.msra.mxu0 %v367
        %526 = vmatprep.subr.mxu0 0.0
        %527 = vmatpush1.msra.mxu0 %v370
        %528 = vmatprep.subr.mxu0 0.0
        %529 = vmatpush1.msra.mxu0 %v373
        %530 = vmatprep.subr.mxu0 0.0
        %531 = vmatpush1.msra.mxu0 %v376
        %532 = vmatprep.subr.mxu0 0.0
        %533 = vmatpush1.msra.mxu0 %v379
        %534 = vmatprep.subr.mxu0 0.0
        %535 = vmatpush1.msra.mxu0 0.0
        %536 = vmatprep.subr.mxu0 0.0
        %537 = vmatpush1.msra.mxu0 0.0
        %538 = vmatprep.subr.mxu0 0.0
        %539 = vmatpush1.msra.mxu0 0.0
        %540 = vmatprep.subr.mxu0 0.0
        %541 = vmatpush1.msra.mxu0 0.0
        %542 = vmatprep.subr.mxu0 0.0
        %543 = vmatpush1.msra.mxu0 0.0
        %544 = vmatprep.subr.mxu0 0.0
        %545 = vmatpush1.msra.mxu0 0.0
        %546 = vmatprep.subr.mxu0 0.0
        %547 = vmatpush1.msra.mxu0 0.0
        %548 = vmatprep.subr.mxu0 0.0
        %549 = vmatpush1.msra.mxu0 0.0
        %550 = vmatprep.subr.mxu0 0.0
        %551 = vmatpush1.msra.mxu0 0.0
        %552 = vmatprep.subr.mxu0 0.0
        %553 = vmatpush1.msra.mxu0 0.0
        %554 = vmatprep.subr.mxu0 0.0
        %555 = vmatpush1.msra.mxu0 0.0
        %556 = vmatprep.subr.mxu0 0.0
        %557 = vmatpush1.msra.mxu0 0.0
        %558 = vmatprep.subr.mxu0 0.0
        %559 = vmatpush1.msra.mxu0 0.0
        %560 = vmatprep.subr.mxu0 0.0
        %561 = vmatpush1.msra.mxu0 0.0
        %562 = vmatprep.subr.mxu0 0.0
        %563 = vmatpush1.msra.mxu0 0.0
        %564 = vmatprep.subr.mxu0 0.0
        %565 = vmatpush1.msra.mxu0 0.0
        %566 = vmatprep.subr.mxu0 0.0
        %567 = vmatpush1.msra.mxu0 0.0
        %568 = vmatprep.subr.mxu0 0.0
        %569 = vmatpush1.msra.mxu0 0.0
        %570 = vmatprep.subr.mxu0 0.0
        %571 = vmatpush1.msra.mxu0 0.0
        %572 = vmatprep.subr.mxu0 0.0
        %573 = vmatpush1.msra.mxu0 0.0
        %574 = vmatprep.subr.mxu0 0.0
        %575 = vmatpush1.msra.mxu0 0.0
        %576 = vmatprep.subr.mxu0 0.0
        %577 = vmatpush1.msra.mxu0 0.0
        %578 = vmatprep.subr.mxu0 0.0
        %579 = vmatpush1.msra.mxu0 0.0
        %580 = vmatprep.subr.mxu0 0.0
        %581 = vmatpush1.msra.mxu0 0.0
        %582 = vmatprep.mubr.f32.mxu0 0.0
        %583 = vmatmul.mubr.f32.gmra.mrb[0].mxu0 %v382
        %v584 = vpop.f32.mrb[0].mxu0
        %v585 = vadd.f32 0.0, %v584
        %v586 = vpop.f32.mrb[0].mxu0
        %587 = vmatprep.mubr.f32.mxu0 0.0
        %588 = vmatmul.mubr.f32.gmra.mrb[0].mxu0 %v385
        %v589 = vpop.f32.mrb[0].mxu0
        %v590 = vadd.f32 0.0, %v589
        %v591 = vpop.f32.mrb[0].mxu0
        %592 = vmatprep.mubr.f32.mxu0 0.0
        %593 = vmatmul.mubr.f32.gmra.mrb[0].mxu0 %v388
        %v594 = vpop.f32.mrb[0].mxu0
        %v595 = vadd.f32 0.0, %v594
        %v596 = vpop.f32.mrb[0].mxu0
        %597 = vmatprep.mubr.f32.mxu0 0.0
        %598 = vmatmul.mubr.f32.gmra.mrb[0].mxu0 %v391
        %v599 = vpop.f32.mrb[0].mxu0
        %v600 = vadd.f32 0.0, %v599
        %v601 = vpop.f32.mrb[0].mxu0
        %602 = vmatprep.mubr.f32.mxu0 0.0
        %603 = vmatmul.mubr.f32.gmra.mrb[0].mxu0 %v394
        %v604 = vpop.f32.mrb[0].mxu0
        %v605 = vadd.f32 0.0, %v604
        %v606 = vpop.f32.mrb[0].mxu0
        %607 = vmatprep.mubr.f32.mxu0 0.0
        %608 = vmatmul.mubr.f32.gmra.mrb[0].mxu0 %v397
        %v609 = vpop.f32.mrb[0].mxu0
        %v610 = vadd.f32 0.0, %v609
        %v611 = vpop.f32.mrb[0].mxu0
        %612 = vmatprep.mubr.f32.mxu0 0.0
        %613 = vmatmul.mubr.f32.gmra.mrb[0].mxu0 %v400
        %v614 = vpop.f32.mrb[0].mxu0
        %v615 = vadd.f32 0.0, %v614
        %v616 = vpop.f32.mrb[0].mxu0
        %617 = vmatprep.mubr.f32.mxu0 0.0
        %618 = vmatmul.mubr.f32.gmra.mrb[0].mxu0 %v403
        %v619 = vpop.f32.mrb[0].mxu0
        %v620 = vadd.f32 0.0, %v619
        %v621 = vpop.f32.mrb[0].mxu0
        %622 = vdwg.mxu0
        %vm631 = vcmask 1040384
        %v632 = vrot.slane %v472, 7
        %v633 = vrot.slane %v478, 7
        %v634 = vsel %vm631, %v632, %v633
        %v635 = vrot.slane %v484, 7
        %v636 = vrot.slane %v490, 7
        %v637 = vsel %vm631, %v635, %v636
        %v638 = vrot.slane %v496, 7
        %v639 = vrot.slane %v502, 7
        %v640 = vsel %vm631, %v638, %v639
        %v641 = vrot.slane %v508, 7
        %v642 = vrot.slane %v514, 7
        %v643 = vsel %vm631, %v641, %v642
        %v652 = vsel %vm631, 0.0, %v632
        %v653 = vsel %vm631, 0.0, %v635
        %v654 = vsel %vm631, 0.0, %v638
        %v655 = vsel %vm631, 0.0, %v641
        %vm664 = vcmask 1046528
        %v665 = vrot.slane %v585, 1
        %v666 = vrot.slane %v590, 1
        %v667 = vsel %vm664, %v665, %v666
        %v668 = vrot.slane %v595, 1
        %v669 = vrot.slane %v600, 1
        %v670 = vsel %vm664, %v668, %v669
        %v671 = vrot.slane %v605, 1
        %v672 = vrot.slane %v610, 1
        %v673 = vsel %vm664, %v671, %v672
        %v674 = vrot.slane %v615, 1
        %v675 = vrot.slane %v620, 1
        %v676 = vsel %vm664, %v674, %v675
        %v685 = vsel %vm664, %v666, 0.0
        %v686 = vsel %vm664, %v669, 0.0
        %v687 = vsel %vm664, %v672, 0.0
        %v688 = vsel %vm664, %v675, 0.0
        %v689 = vadd.f32 %v474, %v652
        %v690 = vadd.f32 %v480, %v634
        %v691 = vadd.f32 %v486, %v653
        %v692 = vadd.f32 %v492, %v637
        %v693 = vadd.f32 %v498, %v654
        %v694 = vadd.f32 %v504, %v640
        %v695 = vadd.f32 %v510, %v655
        %v696 = vadd.f32 %v516, %v643
        %v697 = vadd.f32 %v689, %v667
        %v698 = vadd.f32 %v690, %v685
        %v699 = vadd.f32 %v691, %v670
        %v700 = vadd.f32 %v692, %v686
        %v701 = vadd.f32 %v693, %v673
        %v702 = vadd.f32 %v694, %v687
        %v703 = vadd.f32 %v695, %v676
        %v704 = vadd.f32 %v696, %v688
        %v705 = vld [vmem:[%s2] sm:$0x1]
        %v707 = vlaneseq
        %v708 = vshrl.u32 %v707, 7
        %v709 = vsub.s32 0, %v708
        %v710 = vrot.slane %v705, %v709
        %v712 = vadd.f32 %v697, %v710
        %v713 = vadd.f32 %v698, %v710
        %v714 = vadd.f32 %v699, %v710
        %v715 = vadd.f32 %v700, %v710
        %v716 = vadd.f32 %v701, %v710
        %v717 = vadd.f32 %v702, %v710
        %v718 = vadd.f32 %v703, %v710
        %v719 = vadd.f32 %v704, %v710
        %v720 = vmul.f32 %v712, %v712
        %v721 = vmul.f32 %v713, %v713
        %v722 = vmul.f32 %v714, %v714
        %v723 = vmul.f32 %v715, %v715
        %v724 = vmul.f32 %v716, %v716
        %v725 = vmul.f32 %v717, %v717
        %v726 = vmul.f32 %v718, %v718
        %v727 = vmul.f32 %v719, %v719
        %v728 = vld [vmem:[#allocation7] sm:$0xff]
        %v729 = vld [vmem:[#allocation7 + $0x8] sm:$0xff]
        %v730 = vld [vmem:[#allocation7 + $0x10] sm:$0xff]
        %v731 = vld [vmem:[#allocation7 + $0x18] sm:$0xff]
        %v732 = vld [vmem:[#allocation7 + $0x20] sm:$0xff]
        %v733 = vld [vmem:[#allocation7 + $0x28] sm:$0xff]
        %v734 = vld [vmem:[#allocation7 + $0x30] sm:$0xff]
        %v735 = vld [vmem:[#allocation7 + $0x38] sm:$0xff]
        %v736 = vld [vmem:[#allocation7 + $0x40] sm:$0xff]
        %v737 = vld [vmem:[#allocation7 + $0x48] sm:$0xff]
        %v738 = vld [vmem:[#allocation7 + $0x50] sm:$0xff]
        %v739 = vld [vmem:[#allocation7 + $0x58] sm:$0xff]
        %v740 = vld [vmem:[#allocation7 + $0x60] sm:$0xff]
        %v741 = vld [vmem:[#allocation7 + $0x68] sm:$0xff]
        %v742 = vld [vmem:[#allocation7 + $0x70] sm:$0xff]
        %v743 = vld [vmem:[#allocation7 + $0x78] sm:$0xff]
        %744 = vmatprep.subr.mxu0 0.0
        %745 = vmatpush1.msra.mxu0 %v728
        %746 = vmatprep.subr.mxu0 0.0
        %747 = vmatpush1.msra.mxu0 %v729
        %748 = vmatprep.subr.mxu0 0.0
        %749 = vmatpush1.msra.mxu0 %v730
        %750 = vmatprep.subr.mxu0 0.0
        %751 = vmatpush1.msra.mxu0 %v731
        %752 = vmatprep.subr.mxu0 0.0
        %753 = vmatpush1.msra.mxu0 %v732
        %754 = vmatprep.subr.mxu0 0.0
        %755 = vmatpush1.msra.mxu0 %v733
        %756 = vmatprep.subr.mxu0 0.0
        %757 = vmatpush1.msra.mxu0 %v734
        %758 = vmatprep.subr.mxu0 0.0
        %759 = vmatpush1.msra.mxu0 %v735
        %760 = vmatprep.subr.mxu0 0.0
        %761 = vmatpush1.msra.mxu0 %v736
        %762 = vmatprep.subr.mxu0 0.0
        %763 = vmatpush1.msra.mxu0 %v737
        %764 = vmatprep.subr.mxu0 0.0
        %765 = vmatpush1.msra.mxu0 %v738
        %766 = vmatprep.subr.mxu0 0.0
        %767 = vmatpush1.msra.mxu0 %v739
        %768 = vmatprep.subr.mxu0 0.0
        %769 = vmatpush1.msra.mxu0 %v740
        %770 = vmatprep.subr.mxu0 0.0
        %771 = vmatpush1.msra.mxu0 %v741
        %772 = vmatprep.subr.mxu0 0.0
        %773 = vmatpush1.msra.mxu0 %v742
        %774 = vmatprep.subr.mxu0 0.0
        %775 = vmatpush1.msra.mxu0 %v743
        %776 = vmatprep.subr.mxu0 0.0
        %777 = vmatpush1.msra.mxu0 0.0
        %778 = vmatprep.subr.mxu0 0.0
        %779 = vmatpush1.msra.mxu0 0.0
        %780 = vmatprep.subr.mxu0 0.0
        %781 = vmatpush1.msra.mxu0 0.0
        %782 = vmatprep.subr.mxu0 0.0
        %783 = vmatpush1.msra.mxu0 0.0
        %784 = vmatprep.subr.mxu0 0.0
        %785 = vmatpush1.msra.mxu0 0.0
        %786 = vmatprep.subr.mxu0 0.0
        %787 = vmatpush1.msra.mxu0 0.0
        %788 = vmatprep.subr.mxu0 0.0
        %789 = vmatpush1.msra.mxu0 0.0
        %790 = vmatprep.subr.mxu0 0.0
        %791 = vmatpush1.msra.mxu0 0.0
        %792 = vmatprep.subr.mxu0 0.0
        %793 = vmatpush1.msra.mxu0 0.0
        %794 = vmatprep.subr.mxu0 0.0
        %795 = vmatpush1.msra.mxu0 0.0
        %796 = vmatprep.subr.mxu0 0.0
        %797 = vmatpush1.msra.mxu0 0.0
        %798 = vmatprep.subr.mxu0 0.0
        %799 = vmatpush1.msra.mxu0 0.0
        %800 = vmatprep.subr.mxu0 0.0
        %801 = vmatpush1.msra.mxu0 0.0
        %802 = vmatprep.subr.mxu0 0.0
        %803 = vmatpush1.msra.mxu0 0.0
        %804 = vmatprep.subr.mxu0 0.0
        %805 = vmatpush1.msra.mxu0 0.0
        %806 = vmatprep.subr.mxu0 0.0
        %807 = vmatpush1.msra.mxu0 0.0
        %808 = vmatprep.mubr.f32.mxu0 0.0
        %809 = vmatmul.mubr.f32.gmra.mrb[0].mxu0 %v720
        %v810 = vpop.f32.mrb[0].mxu0
        %v811 = vadd.f32 0.0, %v810
        %v812 = vpop.f32.mrb[0].mxu0
        %813 = vmatprep.mubr.f32.mxu0 0.0
        %814 = vmatmul.mubr.f32.gmra.mrb[0].mxu0 %v721
        %v815 = vpop.f32.mrb[0].mxu0
        %v816 = vadd.f32 0.0, %v815
        %v817 = vpop.f32.mrb[0].mxu0
        %818 = vmatprep.mubr.f32.mxu0 0.0
        %819 = vmatmul.mubr.f32.gmra.mrb[0].mxu0 %v722
        %v820 = vpop.f32.mrb[0].mxu0
        %v821 = vadd.f32 0.0, %v820
        %v822 = vpop.f32.mrb[0].mxu0
        %823 = vmatprep.mubr.f32.mxu0 0.0
        %824 = vmatmul.mubr.f32.gmra.mrb[0].mxu0 %v723
        %v825 = vpop.f32.mrb[0].mxu0
        %v826 = vadd.f32 0.0, %v825
        %v827 = vpop.f32.mrb[0].mxu0
        %828 = vmatprep.mubr.f32.mxu0 0.0
        %829 = vmatmul.mubr.f32.gmra.mrb[0].mxu0 %v724
        %v830 = vpop.f32.mrb[0].mxu0
        %v831 = vadd.f32 0.0, %v830
        %v832 = vpop.f32.mrb[0].mxu0
        %833 = vmatprep.mubr.f32.mxu0 0.0
        %834 = vmatmul.mubr.f32.gmra.mrb[0].mxu0 %v725
        %v835 = vpop.f32.mrb[0].mxu0
        %v836 = vadd.f32 0.0, %v835
        %v837 = vpop.f32.mrb[0].mxu0
        %838 = vmatprep.mubr.f32.mxu0 0.0
        %839 = vmatmul.mubr.f32.gmra.mrb[0].mxu0 %v726
        %v840 = vpop.f32.mrb[0].mxu0
        %v841 = vadd.f32 0.0, %v840
        %v842 = vpop.f32.mrb[0].mxu0
        %843 = vmatprep.mubr.f32.mxu0 0.0
        %844 = vmatmul.mubr.f32.gmra.mrb[0].mxu0 %v727
        %v845 = vpop.f32.mrb[0].mxu0
        %v846 = vadd.f32 0.0, %v845
        %v847 = vpop.f32.mrb[0].mxu0
        %848 = vdwg.mxu0
        %v849 = vmax.f32 %v811, 1e-24
        %v850 = vmax.f32 %v816, 1e-24
        %v851 = vmax.f32 %v821, 1e-24
        %v852 = vmax.f32 %v826, 1e-24
        %v853 = vmax.f32 %v831, 1e-24
        %v854 = vmax.f32 %v836, 1e-24
        %v855 = vmax.f32 %v841, 1e-24
        %v856 = vmax.f32 %v846, 1e-24
        %v857 = vrsqrt.pop %v849
        %v858 = vrsqrt.pop %v850
        %v859 = vrsqrt.pop %v851
        %v860 = vrsqrt.pop %v852
        %v861 = vrsqrt.pop %v853
        %v862 = vrsqrt.pop %v854
        %v863 = vrsqrt.pop %v855
        %v864 = vrsqrt.pop %v856
        %v865 = vmul.f32 %v712, %v857
        %v866 = vmul.f32 %v713, %v858
        %v867 = vmul.f32 %v714, %v859
        %v868 = vmul.f32 %v715, %v860
        %v869 = vmul.f32 %v716, %v861
        %v870 = vmul.f32 %v717, %v862
        %v871 = vmul.f32 %v718, %v863
        %v872 = vmul.f32 %v719, %v864
        %v873 = vld [vmem:[%s343] sm:$0x1]
        %v875 = vlaneseq
        %v876 = vshrl.u32 %v875, 7
        %v877 = vsub.s32 0, %v876
        %v878 = vrot.slane %v873, %v877
        %v880 = vmul.f32 %v865, %v878
        %v881 = vmul.f32 %v866, %v878
        %v882 = vmul.f32 %v867, %v878
        %v883 = vmul.f32 %v868, %v878
        %v884 = vmul.f32 %v869, %v878
        %v885 = vmul.f32 %v870, %v878
        %v886 = vmul.f32 %v871, %v878
        %v887 = vmul.f32 %v872, %v878
        %v888 = vld [vmem:[%s346] sm:$0x1]
        %v890 = vlaneseq
        %v891 = vshrl.u32 %v890, 7
        %v892 = vsub.s32 0, %v891
        %v893 = vrot.slane %v888, %v892
        %v895 = vadd.f32 %v880, %v893
        %v896 = vadd.f32 %v881, %v893
        %v897 = vadd.f32 %v882, %v893
        %v898 = vadd.f32 %v883, %v893
        %v899 = vadd.f32 %v884, %v893
        %v900 = vadd.f32 %v885, %v893
        %v901 = vadd.f32 %v886, %v893
        %v902 = vadd.f32 %v887, %v893
        %v903 = vxor.u32 %v895, 2147483648
        %v904 = vxor.u32 %v896, 2147483648
        %v905 = vxor.u32 %v897, 2147483648
        %v906 = vxor.u32 %v898, 2147483648
        %v907 = vxor.u32 %v899, 2147483648
        %v908 = vxor.u32 %v900, 2147483648
        %v909 = vxor.u32 %v901, 2147483648
        %v910 = vxor.u32 %v902, 2147483648
        %v911 = vmul.f32 %v903, 1.442695
        %v912 = vpow.pop %v911
        %v913 = vmul.f32 %v904, 1.442695
        %v914 = vpow.pop %v913
        %v915 = vmul.f32 %v905, 1.442695
        %v916 = vpow.pop %v915
        %v917 = vmul.f32 %v906, 1.442695
        %v918 = vpow.pop %v917
        %v919 = vmul.f32 %v907, 1.442695
        %v920 = vpow.pop %v919
        %v921 = vmul.f32 %v908, 1.442695
        %v922 = vpow.pop %v921
        %v923 = vmul.f32 %v909, 1.442695
        %v924 = vpow.pop %v923
        %v925 = vmul.f32 %v910, 1.442695
        %v926 = vpow.pop %v925
        %v927 = vadd.f32 %v912, 1.0
        %v928 = vadd.f32 %v914, 1.0
        %v929 = vadd.f32 %v916, 1.0
        %v930 = vadd.f32 %v918, 1.0
        %v931 = vadd.f32 %v920, 1.0
        %v932 = vadd.f32 %v922, 1.0
        %v933 = vadd.f32 %v924, 1.0
        %v934 = vadd.f32 %v926, 1.0
        %v935 = vrcp.pop %v927
        %v936 = vmul.f32 1.0, %v935
        %v937 = vrcp.pop %v928
        %v938 = vmul.f32 1.0, %v937
        %v939 = vrcp.pop %v929
        %v940 = vmul.f32 1.0, %v939
        %v941 = vrcp.pop %v930
        %v942 = vmul.f32 1.0, %v941
        %v943 = vrcp.pop %v931
        %v944 = vmul.f32 1.0, %v943
        %v945 = vrcp.pop %v932
        %v946 = vmul.f32 1.0, %v945
        %v947 = vrcp.pop %v933
        %v948 = vmul.f32 1.0, %v947
        %v949 = vrcp.pop %v934
        %v950 = vmul.f32 1.0, %v949
        %v951 = vmul.f32 %v895, %v936
        %v952 = vmul.f32 %v896, %v938
        %v953 = vmul.f32 %v897, %v940
        %v954 = vmul.f32 %v898, %v942
        %v955 = vmul.f32 %v899, %v944
        %v956 = vmul.f32 %v900, %v946
        %v957 = vmul.f32 %v901, %v948
        %v958 = vmul.f32 %v902, %v950
        %959 = vst [vmem:[%s339] sm:$0xff] %v951
        %960 = vst [vmem:[%s339 + $0x8] sm:$0xff] %v952
        %961 = vst [vmem:[%s339 + $0x10] sm:$0xff] %v953
        %962 = vst [vmem:[%s339 + $0x18] sm:$0xff] %v954
        %963 = vst [vmem:[%s339 + $0x20] sm:$0xff] %v955
        %964 = vst [vmem:[%s339 + $0x28] sm:$0xff] %v956
        %965 = vst [vmem:[%s339 + $0x30] sm:$0xff] %v957
        %966 = vst [vmem:[%s339 + $0x38] sm:$0xff] %v958
        %s967 = sand.u32 %s189, 1
        %s968 = scalar_lea.sflag [#allocation4], %s967
        %s969 = sand.u32 %s189, 1
        %s970 = smul.addr %s969, 64
        %s971 = scalar_lea.vmem [#allocation8], %s970
        // Predicated region
        $region57: #{tpu_custom_call.1} parent=43 // pred_check
          %p972 = pneg %p199
        $region58: #{tpu_custom_call.1} parent=43 // pred_check_branch
          %974 = sbr.rel (%p972) target = $region60
        $region59: #{tpu_custom_call.1} parent=43 // pred_region
          %s975 = smul.u32 4, %s29
          %s977 = ssub.s32 1024, 1024
          %978 = vsyncadd %s968, %s977
          %s979 = smul.addr %s975, 2
          %s980 = smul.addr %s28, 8
          %s981 = sadd.s32 %s979, %s980
          %s982 = smul.addr %s981, 128
          %s983 = scalar_lea.hbm %s6, %s982
          %s984 = sshll.u32 %s971, 4
          %s985 = int_to_ptr.vmem [resolvable:$true] %s984
          %990 = dma.vmem_to_hbm [thread:$0]  %s985, 1024, %s983, %s968, 128, 128, 8
        $region60: #{tpu_custom_call.1} parent=43 // pred_fallthru
          _
      $region44: #{tpu_custom_call.1} parent=5 // pred_fallthru
        _
      %p991 = scmp.le.s32.totalorder 2, %s19
      // Predicated region
      $region61: #{tpu_custom_call.1} parent=5 // pred_check
        %p992 = pneg %p991
      $region62: #{tpu_custom_call.1} parent=5 // pred_check_branch
        %994 = sbr.rel (%p992) target = $region64
      $region63: #{tpu_custom_call.1} parent=5 // pred_region
        %s995 = ssub.s32 %s19, 2
        // Predicated region
        $region65: #{tpu_custom_call.1} parent=63 // pred_check
          %p996 = pneg %p205
        $region66: #{tpu_custom_call.1} parent=63 // pred_check_branch
          %998 = sbr.rel (%p996) target = $region68
        $region67: #{tpu_custom_call.1} parent=63 // pred_region
          %s999 = sand.u32 %s190, 1
          %s1000 = scalar_lea.sflag [#allocation4], %s999
          %s1001 = sand.u32 %s190, 1
          %s1002 = smul.addr %s1001, 64
          %s1003 = scalar_lea.vmem [#allocation8], %s1002
          %1004 = dma.done %s1000, 1024
        $region68: #{tpu_custom_call.1} parent=63 // pred_fallthru
          _
      $region64: #{tpu_custom_call.1} parent=5 // pred_fallthru
        _
    $region6: #{tpu_custom_call.1} parent=1 // loop_footer
      %s23 = sadd.s32 1, %s19
    $region7: #{tpu_custom_call.1} parent=1 // loop_footer_branch
      %18 = sbr.rel target = $region3
    $region8: #{tpu_custom_call.1} parent=1 // loop_exit
      _
    %1005 = vsyncpa [#allocation3], 1
    %s1006 = scalar_lea.sflag [#allocation3], 1
    %1007 = vsyncpa %s1006, 1
    %1008 = vsyncpa [#allocation6], 1
    %1009 = vsyncpa [#allocation4], 1
    %s1010 = scalar_lea.sflag [#allocation4], 1
    %1011 = vsyncpa %s1010, 1

</llo_original>
